<compile_context>
chip_gen: v6e
topology: v6e:2x2x1
jax: 0.10.0
libtpu: 0.0.40
codegen_flags: <defaults>
</compile_context>

<pallas_src>
import functools
import math

import jax
import jax.numpy as jnp
from jax.experimental import pallas as pl
from jax.experimental.pallas import tpu as pltpu  # noqa: F401  (TPU backend)


# ----------------------------------------------------------------------------- kernel

def _mha_kernel(xq_ref, xk_ref, xv_ref, wq_ref, wk_ref, wv_ref, wo_ref, bo_ref,
                o_ref, *, batch, seq, n_heads, d_k, d_v):
    """Fused multi-head attention for the whole (flattened) batch.

    Refs:
      xq/xk/xv : (B*S, D)        fp32 activations
      wq/wk    : (D, H*d_k)      bf16, 1/sqrt(d_k) already folded into wq
      wv       : (D, H*d_v)      bf16
      wo       : (H*d_v, D)      bf16 output-Linear weight
      bo       : (1, D)          fp32 output-Linear bias
      o        : (B*S, D)        fp32
    """
    bf16 = jnp.bfloat16
    f32 = jnp.float32

    # All-head, all-batch projections: one wide lane-dense MXU matmul each.
    xq = xq_ref[...].astype(bf16)
    xk = xk_ref[...].astype(bf16)
    xv = xv_ref[...].astype(bf16)
    q_all = jnp.dot(xq, wq_ref[...], preferred_element_type=f32).astype(bf16)  # (B*S, H*d_k)
    k_all = jnp.dot(xk, wk_ref[...], preferred_element_type=f32).astype(bf16)  # (B*S, H*d_k)
    v_all = jnp.dot(xv, wv_ref[...], preferred_element_type=f32).astype(bf16)  # (B*S, H*d_v)

    bo = bo_ref[...]                                                           # (1, D) fp32

    for b in range(batch):            # static unroll: tiny B, still ONE launch
        r0 = b * seq
        # fp32 accumulator initialised with the output bias (broadcast once).
        out_b = jnp.broadcast_to(bo, (seq, bo.shape[-1]))
        for h in range(n_heads):      # static unroll over heads
            q_h = q_all[r0:r0 + seq, h * d_k:(h + 1) * d_k]
            k_h = k_all[r0:r0 + seq, h * d_k:(h + 1) * d_k]
            v_h = v_all[r0:r0 + seq, h * d_v:(h + 1) * d_v]

            # q @ k^T without an explicit transpose (contract feature dims).
            s = jax.lax.dot_general(q_h, k_h, (((1,), (1,)), ((), ())),
                                    preferred_element_type=f32)               # (S, S) fp32

            # softmax in fp32 (exact reciprocal for parity with the reference).
            s = s - jnp.max(s, axis=-1, keepdims=True)
            p = jnp.exp(s)
            p = p * pl.reciprocal(jnp.sum(p, axis=-1, keepdims=True), approx=False)

            ctx = jnp.dot(p.astype(bf16), v_h,
                          preferred_element_type=f32).astype(bf16)            # (S, d_v)

            # Per-head accumulation into the output projection: no lane-level
            # concatenation / relayout, results stay in the fp32 accumulator.
            out_b = out_b + jnp.dot(ctx, wo_ref[h * d_v:(h + 1) * d_v, :],
                                    preferred_element_type=f32)

        o_ref[r0:r0 + seq, :] = out_b


# ----------------------------------------------------------------------------- wrapper

def multi_attention(xq, xk, xv, params, *, n_heads, d_k, d_v):
    B, S, D = xq.shape
    wq, wk, wv = params["wq"], params["wk"], params["wv"]
    wo, bo = params["wo"], params["bo"]

    # Fold the batch into the row (sublane) axis: one grid step, wider matmuls.
    xq2 = xq.reshape(B * S, D)
    xk2 = xk.reshape(B * S, D)
    xv2 = xv.reshape(B * S, D)

    kernel = functools.partial(_mha_kernel, batch=B, seq=S,
                               n_heads=n_heads, d_k=d_k, d_v=d_v)

    # Block shapes equal full array dims -> (8, 128) rule satisfied for any S, D.
    def full(a):
        return pl.BlockSpec(a.shape, lambda i: (0,) * a.ndim)

    out = pl.pallas_call(
        kernel,
        grid=(1,),
        out_shape=jax.ShapeDtypeStruct((B * S, D), jnp.float32),
        in_specs=[full(xq2), full(xk2), full(xv2),
                  full(wq), full(wk), full(wv), full(wo), full(bo)],
        out_specs=pl.BlockSpec((B * S, D), lambda i: (0, 0)),
        compiler_params=pltpu.CompilerParams(
            dimension_semantics=("arbitrary",)),
    )(xq2, xk2, xv2, wq, wk, wv, wo, bo)

    return out.reshape(B, S, D)


# ----------------------------------------------------------------------------- init & reference

def _xavier_uniform(key, fan_in, fan_out):
    limit = math.sqrt(6.0 / (fan_in + fan_out))
    return jax.random.uniform(key, (fan_in, fan_out), jnp.float32, -limit, limit)


def init_multi_attention(key, d_k, d_v, input_shape, n_heads):
    keys = jax.random.split(key, 3 * n_heads + 1)
    wq = [_xavier_uniform(keys[3 * h + 0], input_shape, d_k) for h in range(n_heads)]
    wk = [_xavier_uniform(keys[3 * h + 1], input_shape, d_k) for h in range(n_heads)]
    wv = [_xavier_uniform(keys[3 * h + 2], input_shape, d_v) for h in range(n_heads)]
    wo = _xavier_uniform(keys[-1], n_heads * d_v, input_shape)
    bo = jnp.zeros((1, input_shape), jnp.float32)   # PyTorch module zero-fills the bias
    scale = 1.0 / math.sqrt(d_k)
    return {
        # per-head fp32 weights (reference path only)
        "wq_heads": wq, "wk_heads": wk, "wv_heads": wv,
        "wo_f32": wo, "bo_f32": bo,
        # fused, lane-dense, bf16-resident weights consumed by the Pallas kernel
        # (1/sqrt(d_k) folded into wq before the bf16 cast).
        "wq": (jnp.concatenate(wq, axis=1) * scale).astype(jnp.bfloat16),  # (D, H*d_k)
        "wk": jnp.concatenate(wk, axis=1).astype(jnp.bfloat16),            # (D, H*d_k)
        "wv": jnp.concatenate(wv, axis=1).astype(jnp.bfloat16),            # (D, H*d_v)
        "wo": wo.astype(jnp.bfloat16),                                     # (H*d_v, D)
        "bo": bo,                                                          # (1, D)
    }


def multi_attention_ref(xq, xk, xv, params, *, n_heads, d_k):
    """Pure-JAX fp32 mirror of the PyTorch MultiAttention forward."""
    outs = []
    for h in range(n_heads):
        q = xq @ params["wq_heads"][h]
        k = xk @ params["wk_heads"][h]
        v = xv @ params["wv_heads"][h]
        s = jnp.einsum("bqd,bkd->bqk", q, k) / math.sqrt(d_k)
        p = jax.nn.softmax(s, axis=-1)
        outs.append(jnp.einsum("bqk,bkd->bqd", p, v))
    concat = jnp.concatenate(outs, axis=-1)
    return concat @ params["wo_f32"] + params["bo_f32"]


# ----------------------------------------------------------------------------- main

if __name__ == "__main__":
    B, S, D = 2, 8, 32          # batch, seq_len, input_shape (as used in 2d/GTF.py)
    d_k = d_v = 16
    n_heads = 2

    key = jax.random.PRNGKey(0)
    kp, kq, kk, kv = jax.random.split(key, 4)
    params = init_multi_attention(kp, d_k, d_v, D, n_heads)
    xq = jax.random.normal(kq, (B, S, D), jnp.float32)
    xk = jax.random.normal(kk, (B, S, D), jnp.float32)
    xv = jax.random.normal(kv, (B, S, D), jnp.float32)

    fwd = jax.jit(functools.partial(multi_attention,
                                    n_heads=n_heads, d_k=d_k, d_v=d_v))
    out = fwd(xq, xk, xv, params)
    jax.block_until_ready(out)

    ref = multi_attention_ref(xq, xk, xv, params, n_heads=n_heads, d_k=d_k)
    max_err = float(jnp.max(jnp.abs(out - ref)))
    mean_err = float(jnp.mean(jnp.abs(out - ref)))

    assert out.shape == (B, S, D)
    # Tolerance accounts for bf16-resident weights and bf16 MXU inputs
    # (fp32 accumulation, exact softmax reciprocal).
    assert max_err < 2e-1 and mean_err < 2e-2, (max_err, mean_err)
    print("KERNEL_OK")
</pallas_src>

<mosaic_0001>
module attributes {stable_mosaic.version = 11 : i64} {
  func.func @_mha_kernel(%arg0: i32, %arg1: memref<16x32xf32, #tpu.memory_space<vmem>>, %arg2: memref<16x32xf32, #tpu.memory_space<vmem>>, %arg3: memref<16x32xf32, #tpu.memory_space<vmem>>, %arg4: memref<32x32xbf16, #tpu.memory_space<vmem>>, %arg5: memref<32x32xbf16, #tpu.memory_space<vmem>>, %arg6: memref<32x32xbf16, #tpu.memory_space<vmem>>, %arg7: memref<32x32xbf16, #tpu.memory_space<vmem>>, %arg8: memref<1x32xf32, #tpu.memory_space<vmem>>, %arg9: memref<16x32xf32, #tpu.memory_space<vmem>>) attributes {dimension_semantics = [#tpu.dimension_semantics<arbitrary>], iteration_bounds = array<i64: 1>, scalar_prefetch = 0 : i64, scratch_operands = 0 : i64, tpu.core_type = #tpu.core_type<tc>, window_params = [{pipeline_mode = #tpu.pipeline_mode<synchronous>, transform_indices = @transform_0, window_bounds = array<i64: 16, 32>}, {pipeline_mode = #tpu.pipeline_mode<synchronous>, transform_indices = @transform_1, window_bounds = array<i64: 16, 32>}, {pipeline_mode = #tpu.pipeline_mode<synchronous>, transform_indices = @transform_2, window_bounds = array<i64: 16, 32>}, {pipeline_mode = #tpu.pipeline_mode<synchronous>, transform_indices = @transform_3, window_bounds = array<i64: 32, 32>}, {pipeline_mode = #tpu.pipeline_mode<synchronous>, transform_indices = @transform_4, window_bounds = array<i64: 32, 32>}, {pipeline_mode = #tpu.pipeline_mode<synchronous>, transform_indices = @transform_5, window_bounds = array<i64: 32, 32>}, {pipeline_mode = #tpu.pipeline_mode<synchronous>, transform_indices = @transform_6, window_bounds = array<i64: 32, 32>}, {pipeline_mode = #tpu.pipeline_mode<synchronous>, transform_indices = @transform_7, window_bounds = array<i64: 1, 32>}, {pipeline_mode = #tpu.pipeline_mode<synchronous>, transform_indices = @transform_8, window_bounds = array<i64: 16, 32>}]} {
    %c0 = arith.constant 0 : index
    %c0_0 = arith.constant 0 : index
    %0 = vector.load %arg1[%c0, %c0_0] : memref<16x32xf32, #tpu.memory_space<vmem>>, vector<16x32xf32>
    %1 = arith.truncf %0 : vector<16x32xf32> to vector<16x32xbf16>
    %c0_1 = arith.constant 0 : index
    %c0_2 = arith.constant 0 : index
    %2 = vector.load %arg2[%c0_1, %c0_2] : memref<16x32xf32, #tpu.memory_space<vmem>>, vector<16x32xf32>
    %3 = arith.truncf %2 : vector<16x32xf32> to vector<16x32xbf16>
    %c0_3 = arith.constant 0 : index
    %c0_4 = arith.constant 0 : index
    %4 = vector.load %arg3[%c0_3, %c0_4] : memref<16x32xf32, #tpu.memory_space<vmem>>, vector<16x32xf32>
    %5 = arith.truncf %4 : vector<16x32xf32> to vector<16x32xbf16>
    %c0_5 = arith.constant 0 : index
    %c0_6 = arith.constant 0 : index
    %6 = vector.load %arg4[%c0_5, %c0_6] : memref<32x32xbf16, #tpu.memory_space<vmem>>, vector<32x32xbf16>
    %cst = arith.constant dense<0.000000e+00> : vector<16x32xf32>
    %7 = tpu.matmul %1, %6, %cst {dimension_numbers = #tpu.dot_dimension_numbers<[1], [0], [0], [1], [0, 0, 1, 1], [], []>} : vector<16x32xbf16>, vector<32x32xbf16>, vector<16x32xf32> -> vector<16x32xf32>
    %8 = arith.truncf %7 : vector<16x32xf32> to vector<16x32xbf16>
    %c0_7 = arith.constant 0 : index
    %c0_8 = arith.constant 0 : index
    %9 = vector.load %arg5[%c0_7, %c0_8] : memref<32x32xbf16, #tpu.memory_space<vmem>>, vector<32x32xbf16>
    %cst_9 = arith.constant dense<0.000000e+00> : vector<16x32xf32>
    %10 = tpu.matmul %3, %9, %cst_9 {dimension_numbers = #tpu.dot_dimension_numbers<[1], [0], [0], [1], [0, 0, 1, 1], [], []>} : vector<16x32xbf16>, vector<32x32xbf16>, vector<16x32xf32> -> vector<16x32xf32>
    %11 = arith.truncf %10 : vector<16x32xf32> to vector<16x32xbf16>
    %c0_10 = arith.constant 0 : index
    %c0_11 = arith.constant 0 : index
    %12 = vector.load %arg6[%c0_10, %c0_11] : memref<32x32xbf16, #tpu.memory_space<vmem>>, vector<32x32xbf16>
    %cst_12 = arith.constant dense<0.000000e+00> : vector<16x32xf32>
    %13 = tpu.matmul %5, %12, %cst_12 {dimension_numbers = #tpu.dot_dimension_numbers<[1], [0], [0], [1], [0, 0, 1, 1], [], []>} : vector<16x32xbf16>, vector<32x32xbf16>, vector<16x32xf32> -> vector<16x32xf32>
    %14 = arith.truncf %13 : vector<16x32xf32> to vector<16x32xbf16>
    %c0_13 = arith.constant 0 : index
    %c0_14 = arith.constant 0 : index
    %15 = vector.load %arg8[%c0_13, %c0_14] : memref<1x32xf32, #tpu.memory_space<vmem>>, vector<1x32xf32>
    %16 = vector.shape_cast %15 : vector<1x32xf32> to vector<1x32xf32>
    %17 = vector.broadcast %16 : vector<1x32xf32> to vector<8x32xf32>
    %18 = vector.extract_strided_slice %8 {offsets = [0, 0], sizes = [8, 16], strides = [1, 1]} : vector<16x32xbf16> to vector<8x16xbf16>
    %19 = vector.extract_strided_slice %11 {offsets = [0, 0], sizes = [8, 16], strides = [1, 1]} : vector<16x32xbf16> to vector<8x16xbf16>
    %20 = vector.extract_strided_slice %14 {offsets = [0, 0], sizes = [8, 16], strides = [1, 1]} : vector<16x32xbf16> to vector<8x16xbf16>
    %cst_15 = arith.constant dense<0.000000e+00> : vector<8x8xf32>
    %21 = tpu.matmul %18, %19, %cst_15 {dimension_numbers = #tpu.dot_dimension_numbers<[1], [1], [0], [0], [0, 0, 1, 0], [], []>} : vector<8x16xbf16>, vector<8x16xbf16>, vector<8x8xf32> -> vector<8x8xf32>
    %cst_16 = arith.constant dense<0xFF800000> : vector<8xf32>
    %22 = vector.multi_reduction <maximumf>, %21, %cst_16 [1] : vector<8x8xf32> to vector<8xf32>
    %23 = vector.shape_cast %22 : vector<8xf32> to vector<8x1xf32>
    %24 = vector.broadcast %23 : vector<8x1xf32> to vector<8x8xf32>
    %25 = arith.subf %21, %24 : vector<8x8xf32>
    %26 = math.exp %25 : vector<8x8xf32>
    %cst_17 = arith.constant dense<0.000000e+00> : vector<8xf32>
    %27 = vector.multi_reduction <add>, %26, %cst_17 [1] : vector<8x8xf32> to vector<8xf32>
    %28 = vector.shape_cast %27 : vector<8xf32> to vector<8x1xf32>
    %29 = tpu.reciprocal %28 : vector<8x1xf32> -> vector<8x1xf32>
    %30 = vector.broadcast %29 : vector<8x1xf32> to vector<8x8xf32>
    %31 = arith.mulf %26, %30 : vector<8x8xf32>
    %32 = arith.truncf %31 : vector<8x8xf32> to vector<8x8xbf16>
    %cst_18 = arith.constant dense<0.000000e+00> : vector<8x16xf32>
    %33 = tpu.matmul %32, %20, %cst_18 {dimension_numbers = #tpu.dot_dimension_numbers<[1], [0], [0], [1], [0, 0, 1, 1], [], []>} : vector<8x8xbf16>, vector<8x16xbf16>, vector<8x16xf32> -> vector<8x16xf32>
    %34 = arith.truncf %33 : vector<8x16xf32> to vector<8x16xbf16>
    %c0_19 = arith.constant 0 : index
    %c0_20 = arith.constant 0 : index
    %35 = vector.load %arg7[%c0_19, %c0_20] : memref<32x32xbf16, #tpu.memory_space<vmem>>, vector<16x32xbf16>
    %cst_21 = arith.constant dense<0.000000e+00> : vector<8x32xf32>
    %36 = tpu.matmul %34, %35, %cst_21 {dimension_numbers = #tpu.dot_dimension_numbers<[1], [0], [0], [1], [0, 0, 1, 1], [], []>} : vector<8x16xbf16>, vector<16x32xbf16>, vector<8x32xf32> -> vector<8x32xf32>
    %37 = arith.addf %17, %36 : vector<8x32xf32>
    %38 = vector.extract_strided_slice %8 {offsets = [0, 16], sizes = [8, 16], strides = [1, 1]} : vector<16x32xbf16> to vector<8x16xbf16>
    %39 = vector.extract_strided_slice %11 {offsets = [0, 16], sizes = [8, 16], strides = [1, 1]} : vector<16x32xbf16> to vector<8x16xbf16>
    %40 = vector.extract_strided_slice %14 {offsets = [0, 16], sizes = [8, 16], strides = [1, 1]} : vector<16x32xbf16> to vector<8x16xbf16>
    %cst_22 = arith.constant dense<0.000000e+00> : vector<8x8xf32>
    %41 = tpu.matmul %38, %39, %cst_22 {dimension_numbers = #tpu.dot_dimension_numbers<[1], [1], [0], [0], [0, 0, 1, 0], [], []>} : vector<8x16xbf16>, vector<8x16xbf16>, vector<8x8xf32> -> vector<8x8xf32>
    %cst_23 = arith.constant dense<0xFF800000> : vector<8xf32>
    %42 = vector.multi_reduction <maximumf>, %41, %cst_23 [1] : vector<8x8xf32> to vector<8xf32>
    %43 = vector.shape_cast %42 : vector<8xf32> to vector<8x1xf32>
    %44 = vector.broadcast %43 : vector<8x1xf32> to vector<8x8xf32>
    %45 = arith.subf %41, %44 : vector<8x8xf32>
    %46 = math.exp %45 : vector<8x8xf32>
    %cst_24 = arith.constant dense<0.000000e+00> : vector<8xf32>
    %47 = vector.multi_reduction <add>, %46, %cst_24 [1] : vector<8x8xf32> to vector<8xf32>
    %48 = vector.shape_cast %47 : vector<8xf32> to vector<8x1xf32>
    %49 = tpu.reciprocal %48 : vector<8x1xf32> -> vector<8x1xf32>
    %50 = vector.broadcast %49 : vector<8x1xf32> to vector<8x8xf32>
    %51 = arith.mulf %46, %50 : vector<8x8xf32>
    %52 = arith.truncf %51 : vector<8x8xf32> to vector<8x8xbf16>
    %cst_25 = arith.constant dense<0.000000e+00> : vector<8x16xf32>
    %53 = tpu.matmul %52, %40, %cst_25 {dimension_numbers = #tpu.dot_dimension_numbers<[1], [0], [0], [1], [0, 0, 1, 1], [], []>} : vector<8x8xbf16>, vector<8x16xbf16>, vector<8x16xf32> -> vector<8x16xf32>
    %54 = arith.truncf %53 : vector<8x16xf32> to vector<8x16xbf16>
    %c16 = arith.constant 16 : index
    %c0_26 = arith.constant 0 : index
    %55 = vector.load %arg7[%c16, %c0_26] : memref<32x32xbf16, #tpu.memory_space<vmem>>, vector<16x32xbf16>
    %cst_27 = arith.constant dense<0.000000e+00> : vector<8x32xf32>
    %56 = tpu.matmul %54, %55, %cst_27 {dimension_numbers = #tpu.dot_dimension_numbers<[1], [0], [0], [1], [0, 0, 1, 1], [], []>} : vector<8x16xbf16>, vector<16x32xbf16>, vector<8x32xf32> -> vector<8x32xf32>
    %57 = arith.addf %37, %56 : vector<8x32xf32>
    %c0_28 = arith.constant 0 : index
    %c0_29 = arith.constant 0 : index
    %58 = vector.load %arg9[%c0_28, %c0_29] : memref<16x32xf32, #tpu.memory_space<vmem>>, vector<8x32xf32>
    tpu.vector_store %arg9[%c0_28, %c0_29], %57 {strides = array<i32>} : memref<16x32xf32, #tpu.memory_space<vmem>>, vector<8x32xf32>,
    %59 = vector.shape_cast %15 : vector<1x32xf32> to vector<1x32xf32>
    %60 = vector.broadcast %59 : vector<1x32xf32> to vector<8x32xf32>
    %61 = vector.extract_strided_slice %8 {offsets = [8, 0], sizes = [8, 16], strides = [1, 1]} : vector<16x32xbf16> to vector<8x16xbf16>
    %62 = vector.extract_strided_slice %11 {offsets = [8, 0], sizes = [8, 16], strides = [1, 1]} : vector<16x32xbf16> to vector<8x16xbf16>
    %63 = vector.extract_strided_slice %14 {offsets = [8, 0], sizes = [8, 16], strides = [1, 1]} : vector<16x32xbf16> to vector<8x16xbf16>
    %cst_30 = arith.constant dense<0.000000e+00> : vector<8x8xf32>
    %64 = tpu.matmul %61, %62, %cst_30 {dimension_numbers = #tpu.dot_dimension_numbers<[1], [1], [0], [0], [0, 0, 1, 0], [], []>} : vector<8x16xbf16>, vector<8x16xbf16>, vector<8x8xf32> -> vector<8x8xf32>
    %cst_31 = arith.constant dense<0xFF800000> : vector<8xf32>
    %65 = vector.multi_reduction <maximumf>, %64, %cst_31 [1] : vector<8x8xf32> to vector<8xf32>
    %66 = vector.shape_cast %65 : vector<8xf32> to vector<8x1xf32>
    %67 = vector.broadcast %66 : vector<8x1xf32> to vector<8x8xf32>
    %68 = arith.subf %64, %67 : vector<8x8xf32>
    %69 = math.exp %68 : vector<8x8xf32>
    %cst_32 = arith.constant dense<0.000000e+00> : vector<8xf32>
    %70 = vector.multi_reduction <add>, %69, %cst_32 [1] : vector<8x8xf32> to vector<8xf32>
    %71 = vector.shape_cast %70 : vector<8xf32> to vector<8x1xf32>
    %72 = tpu.reciprocal %71 : vector<8x1xf32> -> vector<8x1xf32>
    %73 = vector.broadcast %72 : vector<8x1xf32> to vector<8x8xf32>
    %74 = arith.mulf %69, %73 : vector<8x8xf32>
    %75 = arith.truncf %74 : vector<8x8xf32> to vector<8x8xbf16>
    %cst_33 = arith.constant dense<0.000000e+00> : vector<8x16xf32>
    %76 = tpu.matmul %75, %63, %cst_33 {dimension_numbers = #tpu.dot_dimension_numbers<[1], [0], [0], [1], [0, 0, 1, 1], [], []>} : vector<8x8xbf16>, vector<8x16xbf16>, vector<8x16xf32> -> vector<8x16xf32>
    %77 = arith.truncf %76 : vector<8x16xf32> to vector<8x16xbf16>
    %c0_34 = arith.constant 0 : index
    %c0_35 = arith.constant 0 : index
    %78 = vector.load %arg7[%c0_34, %c0_35] : memref<32x32xbf16, #tpu.memory_space<vmem>>, vector<16x32xbf16>
    %cst_36 = arith.constant dense<0.000000e+00> : vector<8x32xf32>
    %79 = tpu.matmul %77, %78, %cst_36 {dimension_numbers = #tpu.dot_dimension_numbers<[1], [0], [0], [1], [0, 0, 1, 1], [], []>} : vector<8x16xbf16>, vector<16x32xbf16>, vector<8x32xf32> -> vector<8x32xf32>
    %80 = arith.addf %60, %79 : vector<8x32xf32>
    %81 = vector.extract_strided_slice %8 {offsets = [8, 16], sizes = [8, 16], strides = [1, 1]} : vector<16x32xbf16> to vector<8x16xbf16>
    %82 = vector.extract_strided_slice %11 {offsets = [8, 16], sizes = [8, 16], strides = [1, 1]} : vector<16x32xbf16> to vector<8x16xbf16>
    %83 = vector.extract_strided_slice %14 {offsets = [8, 16], sizes = [8, 16], strides = [1, 1]} : vector<16x32xbf16> to vector<8x16xbf16>
    %cst_37 = arith.constant dense<0.000000e+00> : vector<8x8xf32>
    %84 = tpu.matmul %81, %82, %cst_37 {dimension_numbers = #tpu.dot_dimension_numbers<[1], [1], [0], [0], [0, 0, 1, 0], [], []>} : vector<8x16xbf16>, vector<8x16xbf16>, vector<8x8xf32> -> vector<8x8xf32>
    %cst_38 = arith.constant dense<0xFF800000> : vector<8xf32>
    %85 = vector.multi_reduction <maximumf>, %84, %cst_38 [1] : vector<8x8xf32> to vector<8xf32>
    %86 = vector.shape_cast %85 : vector<8xf32> to vector<8x1xf32>
    %87 = vector.broadcast %86 : vector<8x1xf32> to vector<8x8xf32>
    %88 = arith.subf %84, %87 : vector<8x8xf32>
    %89 = math.exp %88 : vector<8x8xf32>
    %cst_39 = arith.constant dense<0.000000e+00> : vector<8xf32>
    %90 = vector.multi_reduction <add>, %89, %cst_39 [1] : vector<8x8xf32> to vector<8xf32>
    %91 = vector.shape_cast %90 : vector<8xf32> to vector<8x1xf32>
    %92 = tpu.reciprocal %91 : vector<8x1xf32> -> vector<8x1xf32>
    %93 = vector.broadcast %92 : vector<8x1xf32> to vector<8x8xf32>
    %94 = arith.mulf %89, %93 : vector<8x8xf32>
    %95 = arith.truncf %94 : vector<8x8xf32> to vector<8x8xbf16>
    %cst_40 = arith.constant dense<0.000000e+00> : vector<8x16xf32>
    %96 = tpu.matmul %95, %83, %cst_40 {dimension_numbers = #tpu.dot_dimension_numbers<[1], [0], [0], [1], [0, 0, 1, 1], [], []>} : vector<8x8xbf16>, vector<8x16xbf16>, vector<8x16xf32> -> vector<8x16xf32>
    %97 = arith.truncf %96 : vector<8x16xf32> to vector<8x16xbf16>
    %c16_41 = arith.constant 16 : index
    %c0_42 = arith.constant 0 : index
    %98 = vector.load %arg7[%c16_41, %c0_42] : memref<32x32xbf16, #tpu.memory_space<vmem>>, vector<16x32xbf16>
    %cst_43 = arith.constant dense<0.000000e+00> : vector<8x32xf32>
    %99 = tpu.matmul %97, %98, %cst_43 {dimension_numbers = #tpu.dot_dimension_numbers<[1], [0], [0], [1], [0, 0, 1, 1], [], []>} : vector<8x16xbf16>, vector<16x32xbf16>, vector<8x32xf32> -> vector<8x32xf32>
    %100 = arith.addf %80, %99 : vector<8x32xf32>
    %c8 = arith.constant 8 : index
    %c0_44 = arith.constant 0 : index
    %101 = vector.load %arg9[%c8, %c0_44] : memref<16x32xf32, #tpu.memory_space<vmem>>, vector<8x32xf32>
    tpu.vector_store %arg9[%c8, %c0_44], %100 {strides = array<i32>} : memref<16x32xf32, #tpu.memory_space<vmem>>, vector<8x32xf32>,
    return
  }
  func.func @transform_0(%arg0: i32) -> (i32, i32) {
    %c0_i32 = arith.constant 0 : i32
    %c0_i32_0 = arith.constant 0 : i32
    %c0_i32_1 = arith.constant 0 : i32
    return %c0_i32, %c0_i32_0 : i32, i32
  }
  func.func @transform_1(%arg0: i32) -> (i32, i32) {
    %c0_i32 = arith.constant 0 : i32
    %c0_i32_0 = arith.constant 0 : i32
    %c0_i32_1 = arith.constant 0 : i32
    return %c0_i32, %c0_i32_0 : i32, i32
  }
  func.func @transform_2(%arg0: i32) -> (i32, i32) {
    %c0_i32 = arith.constant 0 : i32
    %c0_i32_0 = arith.constant 0 : i32
    %c0_i32_1 = arith.constant 0 : i32
    return %c0_i32, %c0_i32_0 : i32, i32
  }
  func.func @transform_3(%arg0: i32) -> (i32, i32) {
    %c0_i32 = arith.constant 0 : i32
    %c0_i32_0 = arith.constant 0 : i32
    %c0_i32_1 = arith.constant 0 : i32
    return %c0_i32, %c0_i32_0 : i32, i32
  }
  func.func @transform_4(%arg0: i32) -> (i32, i32) {
    %c0_i32 = arith.constant 0 : i32
    %c0_i32_0 = arith.constant 0 : i32
    %c0_i32_1 = arith.constant 0 : i32
    return %c0_i32, %c0_i32_0 : i32, i32
  }
  func.func @transform_5(%arg0: i32) -> (i32, i32) {
    %c0_i32 = arith.constant 0 : i32
    %c0_i32_0 = arith.constant 0 : i32
    %c0_i32_1 = arith.constant 0 : i32
    return %c0_i32, %c0_i32_0 : i32, i32
  }
  func.func @transform_6(%arg0: i32) -> (i32, i32) {
    %c0_i32 = arith.constant 0 : i32
    %c0_i32_0 = arith.constant 0 : i32
    %c0_i32_1 = arith.constant 0 : i32
    return %c0_i32, %c0_i32_0 : i32, i32
  }
  func.func @transform_7(%arg0: i32) -> (i32, i32) {
    %c0_i32 = arith.constant 0 : i32
    %c0_i32_0 = arith.constant 0 : i32
    %c0_i32_1 = arith.constant 0 : i32
    return %c0_i32, %c0_i32_0 : i32, i32
  }
  func.func @transform_8(%arg0: i32) -> (i32, i32) {
    %c0_i32 = arith.constant 0 : i32
    %c0_i32_0 = arith.constant 0 : i32
    %c0_i32_1 = arith.constant 0 : i32
    return %c0_i32, %c0_i32_0 : i32, i32
  }
}

</mosaic_0001>

<llo_original>
// kernel: multi_attention.1
$region0: #{multi_attention.1}
  #allocation0 [shape = 'u32[]', space=smem, size = 0x4, offset = 0x4, fixed_abs, tag = 'smem constant byte address 0x4 - core index']
  #allocation1 [shape = 'u32[144,128]{1,0:T(1,128)}', space=vmem, size = 0x12000, scoped, tag = 'internal scratch']
  %s0 = inlined_call_operand.hbm [shape: f32[16,32], index: 0, kind: input, shape index: {}]
  %s1 = inlined_call_operand.hbm [shape: f32[16,32], index: 1, kind: input, shape index: {}]
  %s2 = inlined_call_operand.hbm [shape: f32[16,32], index: 2, kind: input, shape index: {}]
  %s3 = inlined_call_operand.vmem [shape: bf16[32,32], index: 3, kind: input, shape index: {}]
  %s4 = inlined_call_operand.hbm [shape: bf16[32,32], index: 4, kind: input, shape index: {}]
  %s5 = inlined_call_operand.hbm [shape: bf16[32,32], index: 5, kind: input, shape index: {}]
  %s6 = inlined_call_operand.hbm [shape: bf16[32,32], index: 6, kind: input, shape index: {}]
  %s7 = inlined_call_operand.hbm [shape: f32[1,32], index: 7, kind: input, shape index: {}]
  %s8 = inlined_call_operand.hbm [shape: f32[16,32], index: 8, kind: output, shape index: {}]
  %s9 = sld [smem:[#allocation0]]
  $region70: #{multi_attention.1} parent=0
    _
  %s11 = ssub.s32 1, %s9
  %s12 = scalar_select 0, %s11, %s9
  $region1: #{multi_attention.1} parent=0
    #allocation2 [shape = 'u8[8192]{0}', space=vmem, size = 0x2000, scoped, tag = 'input window, operand 0, single buffered']
    #allocation3 [shape = 's32[1]{0}', space=sflag, size = 0x4, scoped, tag = 'scoped memory for multi_attention.1']
    #allocation4 [shape = 's32[1]{0}', space=sflag, size = 0x4, scoped, tag = 'scoped memory for multi_attention.1']
    #allocation5 [shape = 'u8[8192]{0}', space=vmem, size = 0x2000, scoped, tag = 'input window, operand 1, single buffered']
    #allocation6 [shape = 's32[1]{0}', space=sflag, size = 0x4, scoped, tag = 'scoped memory for multi_attention.1']
    #allocation7 [shape = 'u8[8192]{0}', space=vmem, size = 0x2000, scoped, tag = 'input window, operand 2, single buffered']
    #allocation8 [shape = 'u8[8192]{0}', space=vmem, size = 0x2000, scoped, tag = 'input window, operand 4, single buffered']
    #allocation9 [shape = 's32[1]{0}', space=sflag, size = 0x4, scoped, tag = 'scoped memory for multi_attention.1']
    #allocation10 [shape = 'u8[8192]{0}', space=vmem, size = 0x2000, scoped, tag = 'input window, operand 5, single buffered']
    #allocation11 [shape = 'u8[8192]{0}', space=vmem, size = 0x2000, scoped, tag = 'input window, operand 6, single buffered']
    #allocation12 [shape = 's32[1]{0}', space=sflag, size = 0x4, scoped, tag = 'scoped memory for multi_attention.1']
    #allocation13 [shape = 'u8[512]{0}', space=vmem, size = 0x400, scoped, tag = 'input window, operand 7, single buffered']
    #allocation14 [shape = 'u8[8192]{0}', space=vmem, size = 0x2000, scoped, tag = 'output window, operand 0, single buffered']
    %13 = vsyncpa [#allocation3], 0
    %14 = vsyncpa [#allocation6], 0
    %15 = vsyncpa [#allocation9], 0
    %16 = vsyncpa [#allocation12], 0
    %17 = vsyncpa [#allocation4], 0
    // Predicated region
    $region2: #{multi_attention.1} parent=1 // pred_check
      _
    $region3: #{multi_attention.1} parent=1 // pred_check_branch
      %19 = sbr.rel (0) target = $region5
    $region4: #{multi_attention.1} parent=1 // pred_region
      %s21 = ssub.s32 256, 256
      %22 = vsyncadd [#allocation3], %s21
      %s23 = sshll.u32 [#allocation2], 4
      %s24 = int_to_ptr.vmem [resolvable:$true] %s23
      %29 = dma.hbm_to_vmem [thread:$0]  %s0, 256, %s24, [#allocation3], 128, 128, 8
    $region5: #{multi_attention.1} parent=1 // pred_fallthru
      _
    // Predicated region
    $region6: #{multi_attention.1} parent=1 // pred_check
      _
    $region7: #{multi_attention.1} parent=1 // pred_check_branch
      %31 = sbr.rel (0) target = $region9
    $region8: #{multi_attention.1} parent=1 // pred_region
      %s33 = ssub.s32 256, 256
      %34 = vsyncadd [#allocation6], %s33
      %s35 = sshll.u32 [#allocation5], 4
      %s36 = int_to_ptr.vmem [resolvable:$true] %s35
      %41 = dma.hbm_to_vmem [thread:$0]  %s1, 256, %s36, [#allocation6], 128, 128, 8
    $region9: #{multi_attention.1} parent=1 // pred_fallthru
      _
    // Predicated region
    $region10: #{multi_attention.1} parent=1 // pred_check
      _
    $region11: #{multi_attention.1} parent=1 // pred_check_branch
      %43 = sbr.rel (0) target = $region13
    $region12: #{multi_attention.1} parent=1 // pred_region
      %s45 = ssub.s32 256, 256
      %46 = vsyncadd [#allocation6], %s45
      %s47 = sshll.u32 [#allocation7], 4
      %s48 = int_to_ptr.vmem [resolvable:$true] %s47
      %53 = dma.hbm_to_vmem [thread:$0]  %s2, 256, %s48, [#allocation6], 128, 128, 8
    $region13: #{multi_attention.1} parent=1 // pred_fallthru
      _
    // Predicated region
    $region14: #{multi_attention.1} parent=1 // pred_check
      _
    $region15: #{multi_attention.1} parent=1 // pred_check_branch
      %55 = sbr.rel (0) target = $region17
    $region16: #{multi_attention.1} parent=1 // pred_region
      _
    $region17: #{multi_attention.1} parent=1 // pred_fallthru
      _
    // Predicated region
    $region18: #{multi_attention.1} parent=1 // pred_check
      _
    $region19: #{multi_attention.1} parent=1 // pred_check_branch
      %57 = sbr.rel (0) target = $region21
    $region20: #{multi_attention.1} parent=1 // pred_region
      %s59 = ssub.s32 256, 256
      %60 = vsyncadd [#allocation9], %s59
      %s61 = sshll.u32 [#allocation8], 4
      %s62 = int_to_ptr.vmem [resolvable:$true] %s61
      %67 = dma.hbm_to_vmem [thread:$0]  %s4, 256, %s62, [#allocation9], 64, 64, 4
    $region21: #{multi_attention.1} parent=1 // pred_fallthru
      _
    // Predicated region
    $region22: #{multi_attention.1} parent=1 // pred_check
      _
    $region23: #{multi_attention.1} parent=1 // pred_check_branch
      %69 = sbr.rel (0) target = $region25
    $region24: #{multi_attention.1} parent=1 // pred_region
      %s71 = ssub.s32 256, 256
      %72 = vsyncadd [#allocation9], %s71
      %s73 = sshll.u32 [#allocation10], 4
      %s74 = int_to_ptr.vmem [resolvable:$true] %s73
      %79 = dma.hbm_to_vmem [thread:$0]  %s5, 256, %s74, [#allocation9], 64, 64, 4
    $region25: #{multi_attention.1} parent=1 // pred_fallthru
      _
    // Predicated region
    $region26: #{multi_attention.1} parent=1 // pred_check
      _
    $region27: #{multi_attention.1} parent=1 // pred_check_branch
      %81 = sbr.rel (0) target = $region29
    $region28: #{multi_attention.1} parent=1 // pred_region
      %s83 = ssub.s32 256, 256
      %84 = vsyncadd [#allocation12], %s83
      %s85 = sshll.u32 [#allocation11], 4
      %s86 = int_to_ptr.vmem [resolvable:$true] %s85
      %91 = dma.hbm_to_vmem [thread:$0]  %s6, 256, %s86, [#allocation12], 64, 64, 4
    $region29: #{multi_attention.1} parent=1 // pred_fallthru
      _
    // Predicated region
    $region30: #{multi_attention.1} parent=1 // pred_check
      _
    $region31: #{multi_attention.1} parent=1 // pred_check_branch
      %93 = sbr.rel (0) target = $region33
    $region32: #{multi_attention.1} parent=1 // pred_region
      %s95 = ssub.s32 16, 16
      %96 = vsyncadd [#allocation12], %s95
      %s98 = sshll.u32 [#allocation13], 4
      %s99 = int_to_ptr.vmem [resolvable:$true] %s98
      %101 = dma.hbm_to_vmem [thread:$0]  %s7, 16, %s99, [#allocation12]
    $region33: #{multi_attention.1} parent=1 // pred_fallthru
      _
    // Predicated region
    $region34: #{multi_attention.1} parent=1 // pred_check
      _
    $region35: #{multi_attention.1} parent=1 // pred_check_branch
      %103 = sbr.rel (0) target = $region37
    $region36: #{multi_attention.1} parent=1 // pred_region
      %104 = dma.done [#allocation3], 256
    $region37: #{multi_attention.1} parent=1 // pred_fallthru
      _
    // Predicated region
    $region38: #{multi_attention.1} parent=1 // pred_check
      _
    $region39: #{multi_attention.1} parent=1 // pred_check_branch
      %106 = sbr.rel (0) target = $region41
    $region40: #{multi_attention.1} parent=1 // pred_region
      %107 = dma.done [#allocation6], 256
    $region41: #{multi_attention.1} parent=1 // pred_fallthru
      _
    // Predicated region
    $region42: #{multi_attention.1} parent=1 // pred_check
      _
    $region43: #{multi_attention.1} parent=1 // pred_check_branch
      %109 = sbr.rel (0) target = $region45
    $region44: #{multi_attention.1} parent=1 // pred_region
      %110 = dma.done [#allocation6], 256
    $region45: #{multi_attention.1} parent=1 // pred_fallthru
      _
    // Predicated region
    $region46: #{multi_attention.1} parent=1 // pred_check
      _
    $region47: #{multi_attention.1} parent=1 // pred_check_branch
      %112 = sbr.rel (0) target = $region49
    $region48: #{multi_attention.1} parent=1 // pred_region
      %113 = dma.done [#allocation9], 256
    $region49: #{multi_attention.1} parent=1 // pred_fallthru
      _
    // Predicated region
    $region50: #{multi_attention.1} parent=1 // pred_check
      _
    $region51: #{multi_attention.1} parent=1 // pred_check_branch
      %115 = sbr.rel (0) target = $region53
    $region52: #{multi_attention.1} parent=1 // pred_region
      %116 = dma.done [#allocation9], 256
    $region53: #{multi_attention.1} parent=1 // pred_fallthru
      _
    // Predicated region
    $region54: #{multi_attention.1} parent=1 // pred_check
      _
    $region55: #{multi_attention.1} parent=1 // pred_check_branch
      %118 = sbr.rel (0) target = $region57
    $region56: #{multi_attention.1} parent=1 // pred_region
      %119 = dma.done [#allocation12], 256
    $region57: #{multi_attention.1} parent=1 // pred_fallthru
      _
    // Predicated region
    $region58: #{multi_attention.1} parent=1 // pred_check
      _
    $region59: #{multi_attention.1} parent=1 // pred_check_branch
      %121 = sbr.rel (0) target = $region61
    $region60: #{multi_attention.1} parent=1 // pred_region
      %122 = dma.done [#allocation12], 16
    $region61: #{multi_attention.1} parent=1 // pred_fallthru
      _
    %v124 = vld [vmem:[#allocation2] sm:$0xff]
    %v125 = vld [vmem:[#allocation2 + $0x8] sm:$0xff]
    %v126 = vpack.c.bf16 %v125, %v124
    %v127 = vld [vmem:[#allocation5] sm:$0xff]
    %v128 = vld [vmem:[#allocation5 + $0x8] sm:$0xff]
    %v129 = vpack.c.bf16 %v128, %v127
    %v130 = vld [vmem:[#allocation7] sm:$0xff]
    %v131 = vld [vmem:[#allocation7 + $0x8] sm:$0xff]
    %v132 = vpack.c.bf16 %v131, %v130
    %v133 = vld [vmem:[%s3] sm:$0xf]
    %v134 = vld [vmem:[%s3 + $0x4] sm:$0xf]
    %v135 = vld [vmem:[%s3 + $0x8] sm:$0xf]
    %v136 = vld [vmem:[%s3 + $0xc] sm:$0xf]
    %v141 = vunpack.c.l.b16 %v133
    %v142 = vunpack.c.l.b16 %v134
    %v143 = vunpack.c.l.b16 %v135
    %v144 = vunpack.c.l.b16 %v136
    %v145 = vpack.c.b16 %v142, %v141
    %v146 = vpack.c.b16 %v144, %v143
    %vm149 = vcmask 261120
    %v151 = vsel %vm149, %v126, 0
    %153 = vmatprep.subr.bf16.mxu0 0
    %154 = vmatpush1.bf16.msra.mxu0 0
    %155 = vmatprep.subr.bf16.mxu0 0
    %156 = vmatpush1.bf16.msra.mxu0 0
    %157 = vmatprep.subr.bf16.mxu0 0
    %158 = vmatpush1.bf16.msra.mxu0 0
    %159 = vmatprep.subr.bf16.mxu0 0
    %160 = vmatpush1.bf16.msra.mxu0 0
    %161 = vmatprep.subr.bf16.mxu0 0
    %162 = vmatpush1.bf16.msra.mxu0 0
    %163 = vmatprep.subr.bf16.mxu0 0
    %164 = vmatpush1.bf16.msra.mxu0 0
    %165 = vmatprep.subr.bf16.mxu0 0
    %166 = vmatpush1.bf16.msra.mxu0 %v146
    %167 = vmatprep.subr.bf16.mxu0 0
    %168 = vmatpush1.bf16.msra.mxu0 %v145
    %169 = vmatprep.subr.bf16.mxu0 0
    %170 = vmatpush2.bf16.msra.mxu0 0
    %171 = vmatprep.subr.bf16.mxu0 0
    %172 = vmatpush2.bf16.msra.mxu0 0
    %173 = vmatprep.subr.bf16.mxu0 0
    %174 = vmatpush2.bf16.msra.mxu0 0
    %175 = vmatprep.subr.bf16.mxu0 0
    %176 = vmatpush2.bf16.msra.mxu0 0
    %177 = vmatprep.subr.bf16.mxu0 0
    %178 = vmatpush2.bf16.msra.mxu0 0
    %179 = vmatprep.subr.bf16.mxu0 0
    %180 = vmatpush2.bf16.msra.mxu0 0
    %181 = vmatprep.subr.bf16.mxu0 0
    %182 = vmatpush2.bf16.msra.mxu0 0
    %183 = vmatprep.subr.bf16.mxu0 0
    %184 = vmatpush2.bf16.msra.mxu0 0
    %185 = vmatprep.mubr.bf16.mxu0 0
    %186 = vmatmul.mubr.bf16.gmra.mxu0 %v151
    %v187 = vpop.f32.mrf.mxu0
    %v188 = vadd.f32 0.0, %v187
    %v189 = vpop.f32.mrf.mxu0
    %v190 = vpop.f32.mrf.mxu0
    %v191 = vadd.f32 0.0, %v190
    %v192 = vpop.f32.mrf.mxu0
    %193 = vdwg.mxu0
    %v194 = vpack.c.bf16 %v191, %v188
    %v195 = vld [vmem:[#allocation8] sm:$0xf]
    %v196 = vld [vmem:[#allocation8 + $0x4] sm:$0xf]
    %v197 = vld [vmem:[#allocation8 + $0x8] sm:$0xf]
    %v198 = vld [vmem:[#allocation8 + $0xc] sm:$0xf]
    %v203 = vunpack.c.l.b16 %v195
    %v204 = vunpack.c.l.b16 %v196
    %v205 = vunpack.c.l.b16 %v197
    %v206 = vunpack.c.l.b16 %v198
    %v207 = vpack.c.b16 %v204, %v203
    %v208 = vpack.c.b16 %v206, %v205
    %v212 = vsel %vm149, %v129, 0
    %214 = vmatprep.subr.bf16.mxu0 0
    %215 = vmatpush1.bf16.msra.mxu0 0
    %216 = vmatprep.subr.bf16.mxu0 0
    %217 = vmatpush1.bf16.msra.mxu0 0
    %218 = vmatprep.subr.bf16.mxu0 0
    %219 = vmatpush1.bf16.msra.mxu0 0
    %220 = vmatprep.subr.bf16.mxu0 0
    %221 = vmatpush1.bf16.msra.mxu0 0
    %222 = vmatprep.subr.bf16.mxu0 0
    %223 = vmatpush1.bf16.msra.mxu0 0
    %224 = vmatprep.subr.bf16.mxu0 0
    %225 = vmatpush1.bf16.msra.mxu0 0
    %226 = vmatprep.subr.bf16.mxu0 0
    %227 = vmatpush1.bf16.msra.mxu0 %v208
    %228 = vmatprep.subr.bf16.mxu0 0
    %229 = vmatpush1.bf16.msra.mxu0 %v207
    %230 = vmatprep.subr.bf16.mxu0 0
    %231 = vmatpush2.bf16.msra.mxu0 0
    %232 = vmatprep.subr.bf16.mxu0 0
    %233 = vmatpush2.bf16.msra.mxu0 0
    %234 = vmatprep.subr.bf16.mxu0 0
    %235 = vmatpush2.bf16.msra.mxu0 0
    %236 = vmatprep.subr.bf16.mxu0 0
    %237 = vmatpush2.bf16.msra.mxu0 0
    %238 = vmatprep.subr.bf16.mxu0 0
    %239 = vmatpush2.bf16.msra.mxu0 0
    %240 = vmatprep.subr.bf16.mxu0 0
    %241 = vmatpush2.bf16.msra.mxu0 0
    %242 = vmatprep.subr.bf16.mxu0 0
    %243 = vmatpush2.bf16.msra.mxu0 0
    %244 = vmatprep.subr.bf16.mxu0 0
    %245 = vmatpush2.bf16.msra.mxu0 0
    %246 = vmatprep.mubr.bf16.mxu0 0
    %247 = vmatmul.mubr.bf16.gmra.mxu0 %v212
    %v248 = vpop.f32.mrf.mxu0
    %v249 = vadd.f32 0.0, %v248
    %v250 = vpop.f32.mrf.mxu0
    %v251 = vpop.f32.mrf.mxu0
    %v252 = vadd.f32 0.0, %v251
    %v253 = vpop.f32.mrf.mxu0
    %254 = vdwg.mxu0
    %v255 = vpack.c.bf16 %v252, %v249
    %v256 = vld [vmem:[#allocation10] sm:$0xf]
    %v257 = vld [vmem:[#allocation10 + $0x4] sm:$0xf]
    %v258 = vld [vmem:[#allocation10 + $0x8] sm:$0xf]
    %v259 = vld [vmem:[#allocation10 + $0xc] sm:$0xf]
    %v264 = vunpack.c.l.b16 %v256
    %v265 = vunpack.c.l.b16 %v257
    %v266 = vunpack.c.l.b16 %v258
    %v267 = vunpack.c.l.b16 %v259
    %v268 = vpack.c.b16 %v265, %v264
    %v269 = vpack.c.b16 %v267, %v266
    %v273 = vsel %vm149, %v132, 0
    %275 = vmatprep.subr.bf16.mxu0 0
    %276 = vmatpush1.bf16.msra.mxu0 0
    %277 = vmatprep.subr.bf16.mxu0 0
    %278 = vmatpush1.bf16.msra.mxu0 0
    %279 = vmatprep.subr.bf16.mxu0 0
    %280 = vmatpush1.bf16.msra.mxu0 0
    %281 = vmatprep.subr.bf16.mxu0 0
    %282 = vmatpush1.bf16.msra.mxu0 0
    %283 = vmatprep.subr.bf16.mxu0 0
    %284 = vmatpush1.bf16.msra.mxu0 0
    %285 = vmatprep.subr.bf16.mxu0 0
    %286 = vmatpush1.bf16.msra.mxu0 0
    %287 = vmatprep.subr.bf16.mxu0 0
    %288 = vmatpush1.bf16.msra.mxu0 %v269
    %289 = vmatprep.subr.bf16.mxu0 0
    %290 = vmatpush1.bf16.msra.mxu0 %v268
    %291 = vmatprep.subr.bf16.mxu0 0
    %292 = vmatpush2.bf16.msra.mxu0 0
    %293 = vmatprep.subr.bf16.mxu0 0
    %294 = vmatpush2.bf16.msra.mxu0 0
    %295 = vmatprep.subr.bf16.mxu0 0
    %296 = vmatpush2.bf16.msra.mxu0 0
    %297 = vmatprep.subr.bf16.mxu0 0
    %298 = vmatpush2.bf16.msra.mxu0 0
    %299 = vmatprep.subr.bf16.mxu0 0
    %300 = vmatpush2.bf16.msra.mxu0 0
    %301 = vmatprep.subr.bf16.mxu0 0
    %302 = vmatpush2.bf16.msra.mxu0 0
    %303 = vmatprep.subr.bf16.mxu0 0
    %304 = vmatpush2.bf16.msra.mxu0 0
    %305 = vmatprep.subr.bf16.mxu0 0
    %306 = vmatpush2.bf16.msra.mxu0 0
    %307 = vmatprep.mubr.bf16.mxu0 0
    %308 = vmatmul.mubr.bf16.gmra.mxu0 %v273
    %v309 = vpop.f32.mrf.mxu0
    %v310 = vadd.f32 0.0, %v309
    %v311 = vpop.f32.mrf.mxu0
    %v312 = vpop.f32.mrf.mxu0
    %v313 = vadd.f32 0.0, %v312
    %v314 = vpop.f32.mrf.mxu0
    %315 = vdwg.mxu0
    %v316 = vpack.c.bf16 %v313, %v310
    %v317 = vld [vmem:[#allocation13] sm:$0x1]
    %v319 = vlaneseq
    %v320 = vshrl.u32 %v319, 7
    %v321 = vsub.s32 0, %v320
    %v322 = vrot.slane %v317, %v321
    %vm324 = vcmask 130048
    %v326 = vsel %vm324, %v194, 0
    %v329 = vsel %vm324, %v255, 0
    %331 = vmatprep.subr.bf16.mxu0 0
    %332 = vmatpush1.bf16.xpose.msra.mxu0 0
    %333 = vmatprep.subr.bf16.mxu0 0
    %334 = vmatpush1.bf16.xpose.msra.mxu0 0
    %335 = vmatprep.subr.bf16.mxu0 0
    %336 = vmatpush1.bf16.xpose.msra.mxu0 0
    %337 = vmatprep.subr.bf16.mxu0 0
    %338 = vmatpush1.bf16.xpose.msra.mxu0 0
    %339 = vmatprep.subr.bf16.mxu0 0
    %340 = vmatpush1.bf16.xpose.msra.mxu0 0
    %341 = vmatprep.subr.bf16.mxu0 0
    %342 = vmatpush1.bf16.xpose.msra.mxu0 0
    %343 = vmatprep.subr.bf16.mxu0 0
    %344 = vmatpush1.bf16.xpose.msra.mxu0 0
    %345 = vmatprep.subr.bf16.mxu0 0
    %346 = vmatpush1.bf16.xpose.msra.mxu0 %v329
    %347 = vmatprep.subr.bf16.mxu0 0
    %348 = vmatpush2.bf16.xpose.msra.mxu0 0
    %349 = vmatprep.subr.bf16.mxu0 0
    %350 = vmatpush2.bf16.xpose.msra.mxu0 0
    %351 = vmatprep.subr.bf16.mxu0 0
    %352 = vmatpush2.bf16.xpose.msra.mxu0 0
    %353 = vmatprep.subr.bf16.mxu0 0
    %354 = vmatpush2.bf16.xpose.msra.mxu0 0
    %355 = vmatprep.subr.bf16.mxu0 0
    %356 = vmatpush2.bf16.xpose.msra.mxu0 0
    %357 = vmatprep.subr.bf16.mxu0 0
    %358 = vmatpush2.bf16.xpose.msra.mxu0 0
    %359 = vmatprep.subr.bf16.mxu0 0
    %360 = vmatpush2.bf16.xpose.msra.mxu0 0
    %361 = vmatprep.subr.bf16.mxu0 0
    %362 = vmatpush2.bf16.xpose.msra.mxu0 0
    %363 = vmatprep.mubr.bf16.mxu0 0
    %364 = vmatmul.mubr.bf16.gmra.mxu0 %v326
    %v365 = vpop.f32.mrf.mxu0
    %v366 = vadd.f32 0.0, %v365
    %v367 = vpop.f32.mrf.mxu0
    %v368 = vpop.f32.mrf.mxu0
    %v369 = vpop.f32.mrf.mxu0
    %370 = vdwg.mxu0
    %vm371 = vcmask 64512
    %v372 = vsel %vm371, %v366, -inf
    %373 = vmax.xlane.f32.xlu0 %v372
    %v374 = vpop.xlane.xlu0 %373
    %v375 = vsub.f32 %v366, %v374
    %v376 = vmul.f32 %v375, 1.442695
    %v377 = vpow.pop %v376
    %v378 = vsel %vm371, %v377, 0.0
    %379 = vadd.xlane.f32.xlu0 %v378
    %v380 = vpop.xlane.xlu0 %379
    %v381 = vrcp.pop %v380
    %v382 = vmul.f32 %v377, %v381
    %v383 = vpack.c.bf16 %v382, %v382
    %v385 = vsel %vm371, %v383, 0
    %vm387 = vcmask 1043456
    %v389 = vsel %vm387, %v316, 0
    %391 = vmatprep.subr.bf16.mxu0 0
    %392 = vmatpush1.bf16.msra.mxu0 0
    %393 = vmatprep.subr.bf16.mxu0 0
    %394 = vmatpush1.bf16.msra.mxu0 0
    %395 = vmatprep.subr.bf16.mxu0 0
    %396 = vmatpush1.bf16.msra.mxu0 0
    %397 = vmatprep.subr.bf16.mxu0 0
    %398 = vmatpush1.bf16.msra.mxu0 0
    %399 = vmatprep.subr.bf16.mxu0 0
    %400 = vmatpush1.bf16.msra.mxu0 0
    %401 = vmatprep.subr.bf16.mxu0 0
    %402 = vmatpush1.bf16.msra.mxu0 0
    %403 = vmatprep.subr.bf16.mxu0 0
    %404 = vmatpush1.bf16.msra.mxu0 0
    %405 = vmatprep.subr.bf16.mxu0 0
    %406 = vmatpush1.bf16.msra.mxu0 %v389
    %407 = vmatprep.subr.bf16.mxu0 0
    %408 = vmatpush2.bf16.msra.mxu0 0
    %409 = vmatprep.subr.bf16.mxu0 0
    %410 = vmatpush2.bf16.msra.mxu0 0
    %411 = vmatprep.subr.bf16.mxu0 0
    %412 = vmatpush2.bf16.msra.mxu0 0
    %413 = vmatprep.subr.bf16.mxu0 0
    %414 = vmatpush2.bf16.msra.mxu0 0
    %415 = vmatprep.subr.bf16.mxu0 0
    %416 = vmatpush2.bf16.msra.mxu0 0
    %417 = vmatprep.subr.bf16.mxu0 0
    %418 = vmatpush2.bf16.msra.mxu0 0
    %419 = vmatprep.subr.bf16.mxu0 0
    %420 = vmatpush2.bf16.msra.mxu0 0
    %421 = vmatprep.subr.bf16.mxu0 0
    %422 = vmatpush2.bf16.msra.mxu0 0
    %423 = vmatprep.mubr.bf16.mxu0 0
    %424 = vmatmul.mubr.bf16.gmra.mxu0 %v385
    %v425 = vpop.f32.mrf.mxu0
    %v426 = vadd.f32 0.0, %v425
    %v427 = vpop.f32.mrf.mxu0
    %v428 = vpop.f32.mrf.mxu0
    %v429 = vpop.f32.mrf.mxu0
    %430 = vdwg.mxu0
    %v431 = vpack.c.bf16 %v426, %v426
    %v432 = vld [vmem:[#allocation11] sm:$0xf]
    %v433 = vld [vmem:[#allocation11 + $0x4] sm:$0xf]
    %v436 = vunpack.c.l.b16 %v432
    %v437 = vunpack.c.l.b16 %v433
    %v438 = vpack.c.b16 %v437, %v436
    %v441 = vsel %vm324, %v431, 0
    %443 = vmatprep.subr.bf16.mxu0 0
    %444 = vmatpush1.bf16.msra.mxu0 0
    %445 = vmatprep.subr.bf16.mxu0 0
    %446 = vmatpush1.bf16.msra.mxu0 0
    %447 = vmatprep.subr.bf16.mxu0 0
    %448 = vmatpush1.bf16.msra.mxu0 0
    %449 = vmatprep.subr.bf16.mxu0 0
    %450 = vmatpush1.bf16.msra.mxu0 0
    %451 = vmatprep.subr.bf16.mxu0 0
    %452 = vmatpush1.bf16.msra.mxu0 0
    %453 = vmatprep.subr.bf16.mxu0 0
    %454 = vmatpush1.bf16.msra.mxu0 0
    %455 = vmatprep.subr.bf16.mxu0 0
    %456 = vmatpush1.bf16.msra.mxu0 0
    %457 = vmatprep.subr.bf16.mxu0 0
    %458 = vmatpush1.bf16.msra.mxu0 %v438
    %459 = vmatprep.subr.bf16.mxu0 0
    %460 = vmatpush2.bf16.msra.mxu0 0
    %461 = vmatprep.subr.bf16.mxu0 0
    %462 = vmatpush2.bf16.msra.mxu0 0
    %463 = vmatprep.subr.bf16.mxu0 0
    %464 = vmatpush2.bf16.msra.mxu0 0
    %465 = vmatprep.subr.bf16.mxu0 0
    %466 = vmatpush2.bf16.msra.mxu0 0
    %467 = vmatprep.subr.bf16.mxu0 0
    %468 = vmatpush2.bf16.msra.mxu0 0
    %469 = vmatprep.subr.bf16.mxu0 0
    %470 = vmatpush2.bf16.msra.mxu0 0
    %471 = vmatprep.subr.bf16.mxu0 0
    %472 = vmatpush2.bf16.msra.mxu0 0
    %473 = vmatprep.subr.bf16.mxu0 0
    %474 = vmatpush2.bf16.msra.mxu0 0
    %475 = vmatprep.mubr.bf16.mxu0 0
    %476 = vmatmul.mubr.bf16.gmra.mxu0 %v441
    %v477 = vpop.f32.mrf.mxu0
    %v478 = vadd.f32 0.0, %v477
    %v479 = vpop.f32.mrf.mxu0
    %v480 = vpop.f32.mrf.mxu0
    %v481 = vpop.f32.mrf.mxu0
    %482 = vdwg.mxu0
    %v483 = vadd.f32 %v322, %v478
    %485 = vrot.lane.b32.xlu0 %v194, 112
    %v486 = vpop.permute.xlu0 %485
    %488 = vrot.lane.b32.xlu0 %v255, 112
    %v489 = vpop.permute.xlu0 %488
    %v491 = vsel %vm324, %v486, 0
    %v494 = vsel %vm324, %v489, 0
    %496 = vmatprep.subr.bf16.mxu0 0
    %497 = vmatpush1.bf16.xpose.msra.mxu0 0
    %498 = vmatprep.subr.bf16.mxu0 0
    %499 = vmatpush1.bf16.xpose.msra.mxu0 0
    %500 = vmatprep.subr.bf16.mxu0 0
    %501 = vmatpush1.bf16.xpose.msra.mxu0 0
    %502 = vmatprep.subr.bf16.mxu0 0
    %503 = vmatpush1.bf16.xpose.msra.mxu0 0
    %504 = vmatprep.subr.bf16.mxu0 0
    %505 = vmatpush1.bf16.xpose.msra.mxu0 0
    %506 = vmatprep.subr.bf16.mxu0 0
    %507 = vmatpush1.bf16.xpose.msra.mxu0 0
    %508 = vmatprep.subr.bf16.mxu0 0
    %509 = vmatpush1.bf16.xpose.msra.mxu0 0
    %510 = vmatprep.subr.bf16.mxu0 0
    %511 = vmatpush1.bf16.xpose.msra.mxu0 %v494
    %512 = vmatprep.subr.bf16.mxu0 0
    %513 = vmatpush2.bf16.xpose.msra.mxu0 0
    %514 = vmatprep.subr.bf16.mxu0 0
    %515 = vmatpush2.bf16.xpose.msra.mxu0 0
    %516 = vmatprep.subr.bf16.mxu0 0
    %517 = vmatpush2.bf16.xpose.msra.mxu0 0
    %518 = vmatprep.subr.bf16.mxu0 0
    %519 = vmatpush2.bf16.xpose.msra.mxu0 0
    %520 = vmatprep.subr.bf16.mxu0 0
    %521 = vmatpush2.bf16.xpose.msra.mxu0 0
    %522 = vmatprep.subr.bf16.mxu0 0
    %523 = vmatpush2.bf16.xpose.msra.mxu0 0
    %524 = vmatprep.subr.bf16.mxu0 0
    %525 = vmatpush2.bf16.xpose.msra.mxu0 0
    %526 = vmatprep.subr.bf16.mxu0 0
    %527 = vmatpush2.bf16.xpose.msra.mxu0 0
    %528 = vmatprep.mubr.bf16.mxu0 0
    %529 = vmatmul.mubr.bf16.gmra.mxu0 %v491
    %v530 = vpop.f32.mrf.mxu0
    %v531 = vadd.f32 0.0, %v530
    %v532 = vpop.f32.mrf.mxu0
    %v533 = vpop.f32.mrf.mxu0
    %v534 = vpop.f32.mrf.mxu0
    %535 = vdwg.mxu0
    %v536 = vsel %vm371, %v531, -inf
    %537 = vmax.xlane.f32.xlu0 %v536
    %v538 = vpop.xlane.xlu0 %537
    %v539 = vsub.f32 %v531, %v538
    %v540 = vmul.f32 %v539, 1.442695
    %v541 = vpow.pop %v540
    %v542 = vsel %vm371, %v541, 0.0
    %543 = vadd.xlane.f32.xlu0 %v542
    %v544 = vpop.xlane.xlu0 %543
    %v545 = vrcp.pop %v544
    %v546 = vmul.f32 %v541, %v545
    %v547 = vpack.c.bf16 %v546, %v546
    %549 = vrot.lane.b32.xlu0 %v316, 112
    %v550 = vpop.permute.xlu0 %549
    %v552 = vsel %vm371, %v547, 0
    %v555 = vsel %vm387, %v550, 0
    %557 = vmatprep.subr.bf16.mxu0 0
    %558 = vmatpush1.bf16.msra.mxu0 0
    %559 = vmatprep.subr.bf16.mxu0 0
    %560 = vmatpush1.bf16.msra.mxu0 0
    %561 = vmatprep.subr.bf16.mxu0 0
    %562 = vmatpush1.bf16.msra.mxu0 0
    %563 = vmatprep.subr.bf16.mxu0 0
    %564 = vmatpush1.bf16.msra.mxu0 0
    %565 = vmatprep.subr.bf16.mxu0 0
    %566 = vmatpush1.bf16.msra.mxu0 0
    %567 = vmatprep.subr.bf16.mxu0 0
    %568 = vmatpush1.bf16.msra.mxu0 0
    %569 = vmatprep.subr.bf16.mxu0 0
    %570 = vmatpush1.bf16.msra.mxu0 0
    %571 = vmatprep.subr.bf16.mxu0 0
    %572 = vmatpush1.bf16.msra.mxu0 %v555
    %573 = vmatprep.subr.bf16.mxu0 0
    %574 = vmatpush2.bf16.msra.mxu0 0
    %575 = vmatprep.subr.bf16.mxu0 0
    %576 = vmatpush2.bf16.msra.mxu0 0
    %577 = vmatprep.subr.bf16.mxu0 0
    %578 = vmatpush2.bf16.msra.mxu0 0
    %579 = vmatprep.subr.bf16.mxu0 0
    %580 = vmatpush2.bf16.msra.mxu0 0
    %581 = vmatprep.subr.bf16.mxu0 0
    %582 = vmatpush2.bf16.msra.mxu0 0
    %583 = vmatprep.subr.bf16.mxu0 0
    %584 = vmatpush2.bf16.msra.mxu0 0
    %585 = vmatprep.subr.bf16.mxu0 0
    %586 = vmatpush2.bf16.msra.mxu0 0
    %587 = vmatprep.subr.bf16.mxu0 0
    %588 = vmatpush2.bf16.msra.mxu0 0
    %589 = vmatprep.mubr.bf16.mxu0 0
    %590 = vmatmul.mubr.bf16.gmra.mxu0 %v552
    %v591 = vpop.f32.mrf.mxu0
    %v592 = vadd.f32 0.0, %v591
    %v593 = vpop.f32.mrf.mxu0
    %v594 = vpop.f32.mrf.mxu0
    %v595 = vpop.f32.mrf.mxu0
    %596 = vdwg.mxu0
    %v597 = vpack.c.bf16 %v592, %v592
    %v598 = vld [vmem:[#allocation11 + $0x8] sm:$0xf]
    %v599 = vld [vmem:[#allocation11 + $0xc] sm:$0xf]
    %v602 = vunpack.c.l.b16 %v598
    %v603 = vunpack.c.l.b16 %v599
    %v604 = vpack.c.b16 %v603, %v602
    %v607 = vsel %vm324, %v597, 0
    %609 = vmatprep.subr.bf16.mxu0 0
    %610 = vmatpush1.bf16.msra.mxu0 0
    %611 = vmatprep.subr.bf16.mxu0 0
    %612 = vmatpush1.bf16.msra.mxu0 0
    %613 = vmatprep.subr.bf16.mxu0 0
    %614 = vmatpush1.bf16.msra.mxu0 0
    %615 = vmatprep.subr.bf16.mxu0 0
    %616 = vmatpush1.bf16.msra.mxu0 0
    %617 = vmatprep.subr.bf16.mxu0 0
    %618 = vmatpush1.bf16.msra.mxu0 0
    %619 = vmatprep.subr.bf16.mxu0 0
    %620 = vmatpush1.bf16.msra.mxu0 0
    %621 = vmatprep.subr.bf16.mxu0 0
    %622 = vmatpush1.bf16.msra.mxu0 0
    %623 = vmatprep.subr.bf16.mxu0 0
    %624 = vmatpush1.bf16.msra.mxu0 %v604
    %625 = vmatprep.subr.bf16.mxu0 0
    %626 = vmatpush2.bf16.msra.mxu0 0
    %627 = vmatprep.subr.bf16.mxu0 0
    %628 = vmatpush2.bf16.msra.mxu0 0
    %629 = vmatprep.subr.bf16.mxu0 0
    %630 = vmatpush2.bf16.msra.mxu0 0
    %631 = vmatprep.subr.bf16.mxu0 0
    %632 = vmatpush2.bf16.msra.mxu0 0
    %633 = vmatprep.subr.bf16.mxu0 0
    %634 = vmatpush2.bf16.msra.mxu0 0
    %635 = vmatprep.subr.bf16.mxu0 0
    %636 = vmatpush2.bf16.msra.mxu0 0
    %637 = vmatprep.subr.bf16.mxu0 0
    %638 = vmatpush2.bf16.msra.mxu0 0
    %639 = vmatprep.subr.bf16.mxu0 0
    %640 = vmatpush2.bf16.msra.mxu0 0
    %641 = vmatprep.mubr.bf16.mxu0 0
    %642 = vmatmul.mubr.bf16.gmra.mxu0 %v607
    %v643 = vpop.f32.mrf.mxu0
    %v644 = vadd.f32 0.0, %v643
    %v645 = vpop.f32.mrf.mxu0
    %v646 = vpop.f32.mrf.mxu0
    %v647 = vpop.f32.mrf.mxu0
    %648 = vdwg.mxu0
    %v649 = vadd.f32 %v483, %v644
    %650 = vst.msk [vmem:[#allocation14] sm:$0xff] %vm149, %v649
    %v651 = vrot.slane %v194, 4
    %v652 = vrot.slane %v255, 4
    %v654 = vsel %vm324, %v651, 0
    %v657 = vsel %vm324, %v652, 0
    %659 = vmatprep.subr.bf16.mxu0 0
    %660 = vmatpush1.bf16.xpose.msra.mxu0 0
    %661 = vmatprep.subr.bf16.mxu0 0
    %662 = vmatpush1.bf16.xpose.msra.mxu0 0
    %663 = vmatprep.subr.bf16.mxu0 0
    %664 = vmatpush1.bf16.xpose.msra.mxu0 0
    %665 = vmatprep.subr.bf16.mxu0 0
    %666 = vmatpush1.bf16.xpose.msra.mxu0 0
    %667 = vmatprep.subr.bf16.mxu0 0
    %668 = vmatpush1.bf16.xpose.msra.mxu0 0
    %669 = vmatprep.subr.bf16.mxu0 0
    %670 = vmatpush1.bf16.xpose.msra.mxu0 0
    %671 = vmatprep.subr.bf16.mxu0 0
    %672 = vmatpush1.bf16.xpose.msra.mxu0 0
    %673 = vmatprep.subr.bf16.mxu0 0
    %674 = vmatpush1.bf16.xpose.msra.mxu0 %v657
    %675 = vmatprep.subr.bf16.mxu0 0
    %676 = vmatpush2.bf16.xpose.msra.mxu0 0
    %677 = vmatprep.subr.bf16.mxu0 0
    %678 = vmatpush2.bf16.xpose.msra.mxu0 0
    %679 = vmatprep.subr.bf16.mxu0 0
    %680 = vmatpush2.bf16.xpose.msra.mxu0 0
    %681 = vmatprep.subr.bf16.mxu0 0
    %682 = vmatpush2.bf16.xpose.msra.mxu0 0
    %683 = vmatprep.subr.bf16.mxu0 0
    %684 = vmatpush2.bf16.xpose.msra.mxu0 0
    %685 = vmatprep.subr.bf16.mxu0 0
    %686 = vmatpush2.bf16.xpose.msra.mxu0 0
    %687 = vmatprep.subr.bf16.mxu0 0
    %688 = vmatpush2.bf16.xpose.msra.mxu0 0
    %689 = vmatprep.subr.bf16.mxu0 0
    %690 = vmatpush2.bf16.xpose.msra.mxu0 0
    %691 = vmatprep.mubr.bf16.mxu0 0
    %692 = vmatmul.mubr.bf16.gmra.mxu0 %v654
    %v693 = vpop.f32.mrf.mxu0
    %v694 = vadd.f32 0.0, %v693
    %v695 = vpop.f32.mrf.mxu0
    %v696 = vpop.f32.mrf.mxu0
    %v697 = vpop.f32.mrf.mxu0
    %698 = vdwg.mxu0
    %v699 = vsel %vm371, %v694, -inf
    %700 = vmax.xlane.f32.xlu0 %v699
    %v701 = vpop.xlane.xlu0 %700
    %v702 = vsub.f32 %v694, %v701
    %v703 = vmul.f32 %v702, 1.442695
    %v704 = vpow.pop %v703
    %v705 = vsel %vm371, %v704, 0.0
    %706 = vadd.xlane.f32.xlu0 %v705
    %v707 = vpop.xlane.xlu0 %706
    %v708 = vrcp.pop %v707
    %v709 = vmul.f32 %v704, %v708
    %v710 = vpack.c.bf16 %v709, %v709
    %v711 = vrot.slane %v316, 4
    %v713 = vsel %vm371, %v710, 0
    %v716 = vsel %vm387, %v711, 0
    %718 = vmatprep.subr.bf16.mxu0 0
    %719 = vmatpush1.bf16.msra.mxu0 0
    %720 = vmatprep.subr.bf16.mxu0 0
    %721 = vmatpush1.bf16.msra.mxu0 0
    %722 = vmatprep.subr.bf16.mxu0 0
    %723 = vmatpush1.bf16.msra.mxu0 0
    %724 = vmatprep.subr.bf16.mxu0 0
    %725 = vmatpush1.bf16.msra.mxu0 0
    %726 = vmatprep.subr.bf16.mxu0 0
    %727 = vmatpush1.bf16.msra.mxu0 0
    %728 = vmatprep.subr.bf16.mxu0 0
    %729 = vmatpush1.bf16.msra.mxu0 0
    %730 = vmatprep.subr.bf16.mxu0 0
    %731 = vmatpush1.bf16.msra.mxu0 0
    %732 = vmatprep.subr.bf16.mxu0 0
    %733 = vmatpush1.bf16.msra.mxu0 %v716
    %734 = vmatprep.subr.bf16.mxu0 0
    %735 = vmatpush2.bf16.msra.mxu0 0
    %736 = vmatprep.subr.bf16.mxu0 0
    %737 = vmatpush2.bf16.msra.mxu0 0
    %738 = vmatprep.subr.bf16.mxu0 0
    %739 = vmatpush2.bf16.msra.mxu0 0
    %740 = vmatprep.subr.bf16.mxu0 0
    %741 = vmatpush2.bf16.msra.mxu0 0
    %742 = vmatprep.subr.bf16.mxu0 0
    %743 = vmatpush2.bf16.msra.mxu0 0
    %744 = vmatprep.subr.bf16.mxu0 0
    %745 = vmatpush2.bf16.msra.mxu0 0
    %746 = vmatprep.subr.bf16.mxu0 0
    %747 = vmatpush2.bf16.msra.mxu0 0
    %748 = vmatprep.subr.bf16.mxu0 0
    %749 = vmatpush2.bf16.msra.mxu0 0
    %750 = vmatprep.mubr.bf16.mxu0 0
    %751 = vmatmul.mubr.bf16.gmra.mxu0 %v713
    %v752 = vpop.f32.mrf.mxu0
    %v753 = vadd.f32 0.0, %v752
    %v754 = vpop.f32.mrf.mxu0
    %v755 = vpop.f32.mrf.mxu0
    %v756 = vpop.f32.mrf.mxu0
    %757 = vdwg.mxu0
    %v758 = vpack.c.bf16 %v753, %v753
    %v759 = vld [vmem:[#allocation11] sm:$0xf]
    %v760 = vld [vmem:[#allocation11 + $0x4] sm:$0xf]
    %v763 = vunpack.c.l.b16 %v759
    %v764 = vunpack.c.l.b16 %v760
    %v765 = vpack.c.b16 %v764, %v763
    %v768 = vsel %vm324, %v758, 0
    %770 = vmatprep.subr.bf16.mxu0 0
    %771 = vmatpush1.bf16.msra.mxu0 0
    %772 = vmatprep.subr.bf16.mxu0 0
    %773 = vmatpush1.bf16.msra.mxu0 0
    %774 = vmatprep.subr.bf16.mxu0 0
    %775 = vmatpush1.bf16.msra.mxu0 0
    %776 = vmatprep.subr.bf16.mxu0 0
    %777 = vmatpush1.bf16.msra.mxu0 0
    %778 = vmatprep.subr.bf16.mxu0 0
    %779 = vmatpush1.bf16.msra.mxu0 0
    %780 = vmatprep.subr.bf16.mxu0 0
    %781 = vmatpush1.bf16.msra.mxu0 0
    %782 = vmatprep.subr.bf16.mxu0 0
    %783 = vmatpush1.bf16.msra.mxu0 0
    %784 = vmatprep.subr.bf16.mxu0 0
    %785 = vmatpush1.bf16.msra.mxu0 %v765
    %786 = vmatprep.subr.bf16.mxu0 0
    %787 = vmatpush2.bf16.msra.mxu0 0
    %788 = vmatprep.subr.bf16.mxu0 0
    %789 = vmatpush2.bf16.msra.mxu0 0
    %790 = vmatprep.subr.bf16.mxu0 0
    %791 = vmatpush2.bf16.msra.mxu0 0
    %792 = vmatprep.subr.bf16.mxu0 0
    %793 = vmatpush2.bf16.msra.mxu0 0
    %794 = vmatprep.subr.bf16.mxu0 0
    %795 = vmatpush2.bf16.msra.mxu0 0
    %796 = vmatprep.subr.bf16.mxu0 0
    %797 = vmatpush2.bf16.msra.mxu0 0
    %798 = vmatprep.subr.bf16.mxu0 0
    %799 = vmatpush2.bf16.msra.mxu0 0
    %800 = vmatprep.subr.bf16.mxu0 0
    %801 = vmatpush2.bf16.msra.mxu0 0
    %802 = vmatprep.mubr.bf16.mxu0 0
    %803 = vmatmul.mubr.bf16.gmra.mxu0 %v768
    %v804 = vpop.f32.mrf.mxu0
    %v805 = vadd.f32 0.0, %v804
    %v806 = vpop.f32.mrf.mxu0
    %v807 = vpop.f32.mrf.mxu0
    %v808 = vpop.f32.mrf.mxu0
    %809 = vdwg.mxu0
    %v810 = vadd.f32 %v322, %v805
    %811 = vrot.lane.b32.xlu0 %v651, 112
    %v812 = vpop.permute.xlu0 %811
    %813 = vrot.lane.b32.xlu0 %v652, 112
    %v814 = vpop.permute.xlu0 %813
    %v816 = vsel %vm324, %v812, 0
    %v819 = vsel %vm324, %v814, 0
    %821 = vmatprep.subr.bf16.mxu0 0
    %822 = vmatpush1.bf16.xpose.msra.mxu0 0
    %823 = vmatprep.subr.bf16.mxu0 0
    %824 = vmatpush1.bf16.xpose.msra.mxu0 0
    %825 = vmatprep.subr.bf16.mxu0 0
    %826 = vmatpush1.bf16.xpose.msra.mxu0 0
    %827 = vmatprep.subr.bf16.mxu0 0
    %828 = vmatpush1.bf16.xpose.msra.mxu0 0
    %829 = vmatprep.subr.bf16.mxu0 0
    %830 = vmatpush1.bf16.xpose.msra.mxu0 0
    %831 = vmatprep.subr.bf16.mxu0 0
    %832 = vmatpush1.bf16.xpose.msra.mxu0 0
    %833 = vmatprep.subr.bf16.mxu0 0
    %834 = vmatpush1.bf16.xpose.msra.mxu0 0
    %835 = vmatprep.subr.bf16.mxu0 0
    %836 = vmatpush1.bf16.xpose.msra.mxu0 %v819
    %837 = vmatprep.subr.bf16.mxu0 0
    %838 = vmatpush2.bf16.xpose.msra.mxu0 0
    %839 = vmatprep.subr.bf16.mxu0 0
    %840 = vmatpush2.bf16.xpose.msra.mxu0 0
    %841 = vmatprep.subr.bf16.mxu0 0
    %842 = vmatpush2.bf16.xpose.msra.mxu0 0
    %843 = vmatprep.subr.bf16.mxu0 0
    %844 = vmatpush2.bf16.xpose.msra.mxu0 0
    %845 = vmatprep.subr.bf16.mxu0 0
    %846 = vmatpush2.bf16.xpose.msra.mxu0 0
    %847 = vmatprep.subr.bf16.mxu0 0
    %848 = vmatpush2.bf16.xpose.msra.mxu0 0
    %849 = vmatprep.subr.bf16.mxu0 0
    %850 = vmatpush2.bf16.xpose.msra.mxu0 0
    %851 = vmatprep.subr.bf16.mxu0 0
    %852 = vmatpush2.bf16.xpose.msra.mxu0 0
    %853 = vmatprep.mubr.bf16.mxu0 0
    %854 = vmatmul.mubr.bf16.gmra.mxu0 %v816
    %v855 = vpop.f32.mrf.mxu0
    %v856 = vadd.f32 0.0, %v855
    %v857 = vpop.f32.mrf.mxu0
    %v858 = vpop.f32.mrf.mxu0
    %v859 = vpop.f32.mrf.mxu0
    %860 = vdwg.mxu0
    %v861 = vsel %vm371, %v856, -inf
    %862 = vmax.xlane.f32.xlu0 %v861
    %v863 = vpop.xlane.xlu0 %862
    %v864 = vsub.f32 %v856, %v863
    %v865 = vmul.f32 %v864, 1.442695
    %v866 = vpow.pop %v865
    %v867 = vsel %vm371, %v866, 0.0
    %868 = vadd.xlane.f32.xlu0 %v867
    %v869 = vpop.xlane.xlu0 %868
    %v870 = vrcp.pop %v869
    %v871 = vmul.f32 %v866, %v870
    %v872 = vpack.c.bf16 %v871, %v871
    %873 = vrot.lane.b32.xlu0 %v711, 112
    %v874 = vpop.permute.xlu0 %873
    %v876 = vsel %vm371, %v872, 0
    %v879 = vsel %vm387, %v874, 0
    %881 = vmatprep.subr.bf16.mxu0 0
    %882 = vmatpush1.bf16.msra.mxu0 0
    %883 = vmatprep.subr.bf16.mxu0 0
    %884 = vmatpush1.bf16.msra.mxu0 0
    %885 = vmatprep.subr.bf16.mxu0 0
    %886 = vmatpush1.bf16.msra.mxu0 0
    %887 = vmatprep.subr.bf16.mxu0 0
    %888 = vmatpush1.bf16.msra.mxu0 0
    %889 = vmatprep.subr.bf16.mxu0 0
    %890 = vmatpush1.bf16.msra.mxu0 0
    %891 = vmatprep.subr.bf16.mxu0 0
    %892 = vmatpush1.bf16.msra.mxu0 0
    %893 = vmatprep.subr.bf16.mxu0 0
    %894 = vmatpush1.bf16.msra.mxu0 0
    %895 = vmatprep.subr.bf16.mxu0 0
    %896 = vmatpush1.bf16.msra.mxu0 %v879
    %897 = vmatprep.subr.bf16.mxu0 0
    %898 = vmatpush2.bf16.msra.mxu0 0
    %899 = vmatprep.subr.bf16.mxu0 0
    %900 = vmatpush2.bf16.msra.mxu0 0
    %901 = vmatprep.subr.bf16.mxu0 0
    %902 = vmatpush2.bf16.msra.mxu0 0
    %903 = vmatprep.subr.bf16.mxu0 0
    %904 = vmatpush2.bf16.msra.mxu0 0
    %905 = vmatprep.subr.bf16.mxu0 0
    %906 = vmatpush2.bf16.msra.mxu0 0
    %907 = vmatprep.subr.bf16.mxu0 0
    %908 = vmatpush2.bf16.msra.mxu0 0
    %909 = vmatprep.subr.bf16.mxu0 0
    %910 = vmatpush2.bf16.msra.mxu0 0
    %911 = vmatprep.subr.bf16.mxu0 0
    %912 = vmatpush2.bf16.msra.mxu0 0
    %913 = vmatprep.mubr.bf16.mxu0 0
    %914 = vmatmul.mubr.bf16.gmra.mxu0 %v876
    %v915 = vpop.f32.mrf.mxu0
    %v916 = vadd.f32 0.0, %v915
    %v917 = vpop.f32.mrf.mxu0
    %v918 = vpop.f32.mrf.mxu0
    %v919 = vpop.f32.mrf.mxu0
    %920 = vdwg.mxu0
    %v921 = vpack.c.bf16 %v916, %v916
    %v922 = vld [vmem:[#allocation11 + $0x8] sm:$0xf]
    %v923 = vld [vmem:[#allocation11 + $0xc] sm:$0xf]
    %v926 = vunpack.c.l.b16 %v922
    %v927 = vunpack.c.l.b16 %v923
    %v928 = vpack.c.b16 %v927, %v926
    %v931 = vsel %vm324, %v921, 0
    %933 = vmatprep.subr.bf16.mxu0 0
    %934 = vmatpush1.bf16.msra.mxu0 0
    %935 = vmatprep.subr.bf16.mxu0 0
    %936 = vmatpush1.bf16.msra.mxu0 0
    %937 = vmatprep.subr.bf16.mxu0 0
    %938 = vmatpush1.bf16.msra.mxu0 0
    %939 = vmatprep.subr.bf16.mxu0 0
    %940 = vmatpush1.bf16.msra.mxu0 0
    %941 = vmatprep.subr.bf16.mxu0 0
    %942 = vmatpush1.bf16.msra.mxu0 0
    %943 = vmatprep.subr.bf16.mxu0 0
    %944 = vmatpush1.bf16.msra.mxu0 0
    %945 = vmatprep.subr.bf16.mxu0 0
    %946 = vmatpush1.bf16.msra.mxu0 0
    %947 = vmatprep.subr.bf16.mxu0 0
    %948 = vmatpush1.bf16.msra.mxu0 %v928
    %949 = vmatprep.subr.bf16.mxu0 0
    %950 = vmatpush2.bf16.msra.mxu0 0
    %951 = vmatprep.subr.bf16.mxu0 0
    %952 = vmatpush2.bf16.msra.mxu0 0
    %953 = vmatprep.subr.bf16.mxu0 0
    %954 = vmatpush2.bf16.msra.mxu0 0
    %955 = vmatprep.subr.bf16.mxu0 0
    %956 = vmatpush2.bf16.msra.mxu0 0
    %957 = vmatprep.subr.bf16.mxu0 0
    %958 = vmatpush2.bf16.msra.mxu0 0
    %959 = vmatprep.subr.bf16.mxu0 0
    %960 = vmatpush2.bf16.msra.mxu0 0
    %961 = vmatprep.subr.bf16.mxu0 0
    %962 = vmatpush2.bf16.msra.mxu0 0
    %963 = vmatprep.subr.bf16.mxu0 0
    %964 = vmatpush2.bf16.msra.mxu0 0
    %965 = vmatprep.mubr.bf16.mxu0 0
    %966 = vmatmul.mubr.bf16.gmra.mxu0 %v931
    %v967 = vpop.f32.mrf.mxu0
    %v968 = vadd.f32 0.0, %v967
    %v969 = vpop.f32.mrf.mxu0
    %v970 = vpop.f32.mrf.mxu0
    %v971 = vpop.f32.mrf.mxu0
    %972 = vdwg.mxu0
    %v973 = vadd.f32 %v810, %v968
    %974 = vst.msk [vmem:[#allocation14 + $0x8] sm:$0xff] %vm149, %v973
    // Predicated region
    $region62: #{multi_attention.1} parent=1 // pred_check
      _
    $region63: #{multi_attention.1} parent=1 // pred_check_branch
      %976 = sbr.rel (0) target = $region65
    $region64: #{multi_attention.1} parent=1 // pred_region
      %s978 = ssub.s32 256, 256
      %979 = vsyncadd [#allocation4], %s978
      %s980 = sshll.u32 [#allocation14], 4
      %s981 = int_to_ptr.vmem [resolvable:$true] %s980
      %986 = dma.vmem_to_hbm [thread:$0]  %s981, 256, %s8, [#allocation4], 128, 128, 8
    $region65: #{multi_attention.1} parent=1 // pred_fallthru
      _
    // Predicated region
    $region66: #{multi_attention.1} parent=1 // pred_check
      _
    $region67: #{multi_attention.1} parent=1 // pred_check_branch
      %988 = sbr.rel (0) target = $region69
    $region68: #{multi_attention.1} parent=1 // pred_region
      %989 = dma.done [#allocation4], 256
    $region69: #{multi_attention.1} parent=1 // pred_fallthru
      _
    %990 = vsyncpa [#allocation3], 1
    %991 = vsyncpa [#allocation6], 1
    %992 = vsyncpa [#allocation9], 1
    %993 = vsyncpa [#allocation12], 1
    %994 = vsyncpa [#allocation4], 1

</llo_original>
